<compile_context>
chip_gen: v7x
topology: tpu7x:2x2x1
jax: 0.10.0
libtpu: 0.0.40
codegen_flags: <defaults>
</compile_context>

<pallas_src>
import functools

import jax
import jax.numpy as jnp
from jax.experimental import pallas as pl
from jax.experimental.pallas import tpu as pltpu

_EPS = 1e-8  # nn.CosineSimilarity default


def _rankcosine_kernel(pred_ref, true_ref, out_ref):
    # Hot path: one (tb, F) tile of pred/true -> per-row cosine -> per-row loss.
    p = pred_ref[...].astype(jnp.float32)
    t = true_ref[...].astype(jnp.float32)
    dot = jnp.sum(p * t, axis=1, keepdims=True)   # (tb, 1)
    pn = jnp.sum(p * p, axis=1, keepdims=True)    # (tb, 1)
    tn = jnp.sum(t * t, axis=1, keepdims=True)    # (tb, 1)
    denom = jnp.maximum(jnp.sqrt(pn * tn), jnp.float32(_EPS))
    cos = dot / denom
    # (1 - cos) / 0.5  ==  2 * (1 - cos)
    out_ref[...] = (jnp.float32(1.0) - cos) * jnp.float32(2.0)


def _round_up(x, m):
    return ((x + m - 1) // m) * m


@functools.partial(jax.jit, static_argnames=("tb",))
def list_wise_rankcosine(pred, true, *, tb=1024):
    """Pallas implementation of mean((1 - cosine_similarity(pred, true, dim=1)) / 0.5).

    pred, true : (B, F) float arrays
    returns    : scalar float32 loss
    """
    B, F = pred.shape
    assert true.shape == (B, F)

    # Cap the row tile so the double-buffered streaming footprint
    # (2 inputs x 2 buffers x tb*F*itemsize) stays ~<= 8 MiB on every TPU gen.
    bytes_per_row = F * jnp.dtype(pred.dtype).itemsize
    vmem_budget = 8 * 1024 * 1024
    max_tb = max(8, (vmem_budget // (4 * bytes_per_row)) // 8 * 8)
    tb_eff = int(min(tb, max_tb, _round_up(B, 8)))

    # Pad the batch so it divides evenly into tiles (padded rows sliced off
    # before the final mean, so they never affect the result).
    B_pad = _round_up(B, tb_eff)
    if B_pad != B:
        pad = ((0, B_pad - B), (0, 0))
        pred = jnp.pad(pred, pad)
        true = jnp.pad(true, pad)

    per_row = pl.pallas_call(
        _rankcosine_kernel,
        out_shape=jax.ShapeDtypeStruct((B_pad, 1), jnp.float32),
        grid_spec=pltpu.PrefetchScalarGridSpec(
            num_scalar_prefetch=0,
            grid=(B_pad // tb_eff,),
            in_specs=[
                pl.BlockSpec((tb_eff, F), lambda i: (i, 0)),  # pred rows
                pl.BlockSpec((tb_eff, F), lambda i: (i, 0)),  # true rows
            ],
            out_specs=pl.BlockSpec((tb_eff, 1), lambda i: (i, 0)),
        ),
        compiler_params=pltpu.CompilerParams(
            dimension_semantics=("parallel",),  # independent row tiles (megacore-friendly)
        ),
    )(pred, true)

    # Trivial final reduction over B scalars in JAX; drop padded rows.
    return jnp.mean(per_row[:B, 0])


def _reference(pred, true, eps=_EPS):
    p = pred.astype(jnp.float32)
    t = true.astype(jnp.float32)
    dot = jnp.sum(p * t, axis=1)
    denom = jnp.maximum(jnp.sqrt(jnp.sum(p * p, axis=1) * jnp.sum(t * t, axis=1)), eps)
    cos = dot / denom
    return jnp.mean((1.0 - cos) / 0.5)


if __name__ == "__main__":
    key = jax.random.PRNGKey(0)
    k_pred, k_true = jax.random.split(key)

    B, F = 16, 128  # small, lane-aligned shapes consistent with a (batch, list) loss
    pred = jax.random.normal(k_pred, (B, F), dtype=jnp.float32)
    true = jax.random.normal(k_true, (B, F), dtype=jnp.float32)

    loss = jax.block_until_ready(list_wise_rankcosine(pred, true))
    ref = jax.block_until_ready(_reference(pred, true))
    assert jnp.allclose(loss, ref, rtol=1e-5, atol=1e-5), (loss, ref)

    print("KERNEL_OK")
</pallas_src>

<mosaic_0001>
module attributes {stable_mosaic.version = 11 : i64} {
  func.func @_rankcosine_kernel(%arg0: i32, %arg1: memref<16x128xf32, #tpu.memory_space<vmem>>, %arg2: memref<16x128xf32, #tpu.memory_space<vmem>>, %arg3: memref<16x1xf32, #tpu.memory_space<vmem>>) attributes {dimension_semantics = [#tpu.dimension_semantics<parallel>], iteration_bounds = array<i64: 1>, scalar_prefetch = 0 : i64, scratch_operands = 0 : i64, tpu.core_type = #tpu.core_type<tc>, window_params = [{transform_indices = @transform_0, window_bounds = array<i64: 16, 128>}, {transform_indices = @transform_1, window_bounds = array<i64: 16, 128>}, {transform_indices = @transform_2, window_bounds = array<i64: 16, 1>}]} {
    %c0 = arith.constant 0 : index
    %c0_0 = arith.constant 0 : index
    %0 = vector.load %arg1[%c0, %c0_0] : memref<16x128xf32, #tpu.memory_space<vmem>>, vector<16x128xf32>
    %c0_1 = arith.constant 0 : index
    %c0_2 = arith.constant 0 : index
    %1 = vector.load %arg2[%c0_1, %c0_2] : memref<16x128xf32, #tpu.memory_space<vmem>>, vector<16x128xf32>
    %2 = arith.mulf %0, %1 : vector<16x128xf32>
    %cst = arith.constant dense<0.000000e+00> : vector<16xf32>
    %3 = vector.multi_reduction <add>, %2, %cst [1] : vector<16x128xf32> to vector<16xf32>
    %4 = vector.shape_cast %3 : vector<16xf32> to vector<16x1xf32>
    %5 = arith.mulf %0, %0 : vector<16x128xf32>
    %cst_3 = arith.constant dense<0.000000e+00> : vector<16xf32>
    %6 = vector.multi_reduction <add>, %5, %cst_3 [1] : vector<16x128xf32> to vector<16xf32>
    %7 = vector.shape_cast %6 : vector<16xf32> to vector<16x1xf32>
    %8 = arith.mulf %1, %1 : vector<16x128xf32>
    %cst_4 = arith.constant dense<0.000000e+00> : vector<16xf32>
    %9 = vector.multi_reduction <add>, %8, %cst_4 [1] : vector<16x128xf32> to vector<16xf32>
    %10 = vector.shape_cast %9 : vector<16xf32> to vector<16x1xf32>
    %11 = arith.mulf %7, %10 : vector<16x1xf32>
    %12 = math.sqrt %11 : vector<16x1xf32>
    %cst_5 = arith.constant 9.99999993E-9 : f32
    %13 = vector.broadcast %cst_5 : f32 to vector<16x1xf32>
    %14 = arith.maximumf %12, %13 : vector<16x1xf32>
    %15 = arith.divf %4, %14 : vector<16x1xf32>
    %cst_6 = arith.constant 1.000000e+00 : f32
    %16 = vector.broadcast %cst_6 : f32 to vector<16x1xf32>
    %17 = arith.subf %16, %15 : vector<16x1xf32>
    %cst_7 = arith.constant 2.000000e+00 : f32
    %18 = vector.broadcast %cst_7 : f32 to vector<16x1xf32>
    %19 = arith.mulf %17, %18 : vector<16x1xf32>
    %c0_8 = arith.constant 0 : index
    %c0_9 = arith.constant 0 : index
    %20 = vector.load %arg3[%c0_8, %c0_9] : memref<16x1xf32, #tpu.memory_space<vmem>>, vector<16x1xf32>
    tpu.vector_store %arg3[%c0_8, %c0_9], %19 {strides = array<i32>} : memref<16x1xf32, #tpu.memory_space<vmem>>, vector<16x1xf32>,
    return
  }
  func.func @transform_0(%arg0: i32) -> (i32, i32) {
    %c0_i32 = arith.constant 0 : i32
    %c0_i32_0 = arith.constant 0 : i32
    return %arg0, %c0_i32 : i32, i32
  }
  func.func @transform_1(%arg0: i32) -> (i32, i32) {
    %c0_i32 = arith.constant 0 : i32
    %c0_i32_0 = arith.constant 0 : i32
    return %arg0, %c0_i32 : i32, i32
  }
  func.func @transform_2(%arg0: i32) -> (i32, i32) {
    %c0_i32 = arith.constant 0 : i32
    %c0_i32_0 = arith.constant 0 : i32
    return %arg0, %c0_i32 : i32, i32
  }
}

</mosaic_0001>

<llo_original>
// kernel: list_wise_rankcosine.1
$region0: #{list_wise_rankcosine.1}
  #allocation0 [shape = 'u32[]', space=smem, size = 0x4, offset = 0x4, fixed_abs, tag = 'smem constant byte address 0x4 - core index']
  #allocation1 [shape = 'u32[144,128]{1,0:T(1,128)}', space=vmem, size = 0x12000, scoped, tag = 'internal scratch']
  %s0 = inlined_call_operand.hbm [shape: f32[16,128], index: 0, kind: input, shape index: {}]
  %s1 = inlined_call_operand.hbm [shape: f32[16,128], index: 1, kind: input, shape index: {}]
  %s2 = inlined_call_operand.vmem [shape: f32[16,1], index: 2, kind: output, shape index: {}]
  %s3 = sld [smem:[#allocation0]]
  $region26: #{list_wise_rankcosine.1} parent=0
    _
  %s5 = ssub.s32 1, %s3
  %s6 = scalar_select 0, %s5, %s3
  $region1: #{list_wise_rankcosine.1} parent=0
    #allocation2 [shape = 'u8[8192]{0}', space=vmem, size = 0x2000, scoped, tag = 'input window, operand 0, single buffered']
    #allocation3 [shape = 's32[1]{0}', space=sflag, size = 0x4, scoped, tag = 'scoped memory for list_wise_rankcosine.1']
    #allocation4 [shape = 'u8[8192]{0}', space=vmem, size = 0x2000, scoped, tag = 'input window, operand 1, single buffered']
    #allocation5 [shape = 's32[1]{0}', space=sflag, size = 0x4, scoped, tag = 'scoped memory for list_wise_rankcosine.1']
    %7 = vsyncpa [#allocation3], 0
    %8 = vsyncpa [#allocation5], 0
    // Predicated region
    $region2: #{list_wise_rankcosine.1} parent=1 // pred_check
      _
    $region3: #{list_wise_rankcosine.1} parent=1 // pred_check_branch
      %10 = sbr.rel (0) target = $region5
    $region4: #{list_wise_rankcosine.1} parent=1 // pred_region
      %s12 = ssub.s32 256, 256
      %13 = vsyncadd [#allocation3], %s12
      %s14 = sshll.u32 [#allocation2], 4
      %s15 = int_to_ptr.vmem [resolvable:$true] %s14
      %20 = dma.hbm_to_vmem [thread:$0]  %s0, 256, %s15, [#allocation3], 128, 128, 8
    $region5: #{list_wise_rankcosine.1} parent=1 // pred_fallthru
      _
    // Predicated region
    $region6: #{list_wise_rankcosine.1} parent=1 // pred_check
      _
    $region7: #{list_wise_rankcosine.1} parent=1 // pred_check_branch
      %22 = sbr.rel (0) target = $region9
    $region8: #{list_wise_rankcosine.1} parent=1 // pred_region
      %s24 = ssub.s32 256, 256
      %25 = vsyncadd [#allocation5], %s24
      %s26 = sshll.u32 [#allocation4], 4
      %s27 = int_to_ptr.vmem [resolvable:$true] %s26
      %32 = dma.hbm_to_vmem [thread:$0]  %s1, 256, %s27, [#allocation5], 128, 128, 8
    $region9: #{list_wise_rankcosine.1} parent=1 // pred_fallthru
      _
    // Predicated region
    $region10: #{list_wise_rankcosine.1} parent=1 // pred_check
      _
    $region11: #{list_wise_rankcosine.1} parent=1 // pred_check_branch
      %34 = sbr.rel (0) target = $region13
    $region12: #{list_wise_rankcosine.1} parent=1 // pred_region
      %35 = dma.done [#allocation3], 256
    $region13: #{list_wise_rankcosine.1} parent=1 // pred_fallthru
      _
    // Predicated region
    $region14: #{list_wise_rankcosine.1} parent=1 // pred_check
      _
    $region15: #{list_wise_rankcosine.1} parent=1 // pred_check_branch
      %37 = sbr.rel (0) target = $region17
    $region16: #{list_wise_rankcosine.1} parent=1 // pred_region
      %38 = dma.done [#allocation5], 256
    $region17: #{list_wise_rankcosine.1} parent=1 // pred_fallthru
      _
    %v39 = vld [vmem:[#allocation2] sm:$0xff]
    %v40 = vld [vmem:[#allocation2 + $0x8] sm:$0xff]
    %v41 = vld [vmem:[#allocation4] sm:$0xff]
    %v42 = vld [vmem:[#allocation4 + $0x8] sm:$0xff]
    %v43 = vmul.f32 %v39, %v41
    %v44 = vmul.f32 %v40, %v42
    %45 = vadd.xlane.f32.xlu0 %v43
    %v46 = vpop.xlane.xlu0 %45
    %47 = vadd.xlane.f32.xlu0 %v44
    %v48 = vpop.xlane.xlu0 %47
    %v49 = vmul.f32 %v39, %v39
    %v50 = vmul.f32 %v40, %v40
    %51 = vadd.xlane.f32.xlu0 %v49
    %v52 = vpop.xlane.xlu0 %51
    %53 = vadd.xlane.f32.xlu0 %v50
    %v54 = vpop.xlane.xlu0 %53
    %v55 = vmul.f32 %v41, %v41
    %v56 = vmul.f32 %v42, %v42
    %57 = vadd.xlane.f32.xlu0 %v55
    %v58 = vpop.xlane.xlu0 %57
    %59 = vadd.xlane.f32.xlu0 %v56
    %v60 = vpop.xlane.xlu0 %59
    %v61 = vmul.f32 %v52, %v58
    %v62 = vmul.f32 %v54, %v60
    %v63 = vrsqrt.pop %v61
    %v64 = vmul.f32 %v61, %v63
    %vm65 = vcmp.eq.f32.partialorder %v61, inf
    %v66 = vsel %vm65, %v61, %v64
    %vm67 = vcmp.eq.f32.partialorder %v61, 0.0
    %v68 = vand.u32 %v61, 2147483648
    %v69 = vsel %vm67, %v68, %v66
    %v70 = vrsqrt.pop %v62
    %v71 = vmul.f32 %v62, %v70
    %vm72 = vcmp.eq.f32.partialorder %v62, inf
    %v73 = vsel %vm72, %v62, %v71
    %vm74 = vcmp.eq.f32.partialorder %v62, 0.0
    %v75 = vand.u32 %v62, 2147483648
    %v76 = vsel %vm74, %v75, %v73
    %v77 = vmax.f32 %v69, 1e-08
    %v78 = vmax.f32 %v76, 1e-08
    %v79 = vrcp.pop %v77
    %v80 = vmul.f32 %v46, %v79
    %v81 = vrcp.pop %v78
    %v82 = vmul.f32 %v48, %v81
    %v83 = vsub.f32 1.0, %v80
    %v84 = vsub.f32 1.0, %v82
    %v85 = vmul.f32 %v83, 2.0
    %v86 = vmul.f32 %v84, 2.0
    %vm87 = vcmask 7168
    %88 = vst.msk [vmem:[%s2] sm:$0xff] %vm87, %v85
    %89 = vst.msk [vmem:[%s2 + $0x8] sm:$0xff] %vm87, %v86
    // Predicated region
    $region18: #{list_wise_rankcosine.1} parent=1 // pred_check
      _
    $region19: #{list_wise_rankcosine.1} parent=1 // pred_check_branch
      %91 = sbr.rel (0) target = $region21
    $region20: #{list_wise_rankcosine.1} parent=1 // pred_region
      _
    $region21: #{list_wise_rankcosine.1} parent=1 // pred_fallthru
      _
    // Predicated region
    $region22: #{list_wise_rankcosine.1} parent=1 // pred_check
      _
    $region23: #{list_wise_rankcosine.1} parent=1 // pred_check_branch
      %93 = sbr.rel (0) target = $region25
    $region24: #{list_wise_rankcosine.1} parent=1 // pred_region
      _
    $region25: #{list_wise_rankcosine.1} parent=1 // pred_fallthru
      _
    %94 = vsyncpa [#allocation3], 1
    %95 = vsyncpa [#allocation5], 1

</llo_original>
